<compile_context>
chip_gen: v5e
topology: v5e:2x2
jax: 0.10.0
libtpu: 0.0.40
codegen_flags: <defaults>
</compile_context>

<pallas_src>
import functools

import jax
import jax.numpy as jnp
from jax.experimental import pallas as pl
from jax.experimental.pallas import tpu as pltpu

_LANES = 128
_TARGET_BLOCK_BYTES = 4 * 1024 * 1024  # ~4 MiB per input block (per grid step)


def _round_up(x, m):
    return ((x + m - 1) // m) * m


def _cdiv(a, b):
    return -(-a // b)


def _block_l1_sum_kernel(cur_ref, last_ref, out_ref, *, block_rows, valid_rows,
                         mask_tail):
    """One grid step: partial sum of |cur - last| over its row block."""
    diff = cur_ref[...].astype(jnp.float32) - last_ref[...].astype(jnp.float32)
    absd = jnp.abs(diff)
    if mask_tail:
        # Last block overruns the (rows, 128) slab; mask garbage tail rows.
        b = pl.program_id(0)
        row = jax.lax.broadcasted_iota(jnp.int32, absd.shape, 0)
        absd = jnp.where(b * block_rows + row < valid_rows, absd, 0.0)
    # Single cross-lane/sublane reduce per step -> (1, 1) partial.
    out_ref[...] = jnp.sum(absd, keepdims=True)


def _abs_diff_sum(cur2d, last2d, block_rows, num_blocks, valid_rows):
    """sum(|cur2d - last2d|) over the valid rows, via a 1-D streaming grid."""
    itemsize = jnp.dtype(cur2d.dtype).itemsize
    kernel = functools.partial(
        _block_l1_sum_kernel,
        block_rows=block_rows,
        valid_rows=valid_rows,
        mask_tail=(valid_rows % block_rows != 0),
    )
    in_spec = pl.BlockSpec((block_rows, _LANES), lambda b: (b, 0))
    partials = pl.pallas_call(
        kernel,
        out_shape=jax.ShapeDtypeStruct((num_blocks, 1), jnp.float32),
        grid=(num_blocks,),
        in_specs=[in_spec, in_spec],
        out_specs=pl.BlockSpec((1, 1), lambda b: (b, 0)),
        compiler_params=pltpu.CompilerParams(
            dimension_semantics=("parallel",),
            vmem_limit_bytes=32 * 1024 * 1024,
        ),
        cost_estimate=pl.CostEstimate(
            flops=3 * cur2d.size,
            transcendentals=0,
            bytes_accessed=2 * cur2d.size * itemsize + num_blocks * 4,
        ),
    )(cur2d, last2d)
    return jnp.sum(partials)


def _pairwise_l1_forward(current, last):
    n = current.size
    itemsize = jnp.dtype(current.dtype).itemsize
    # sublane packing: f32 -> 8-row tiles, bf16/f16 -> 16, int8/fp8 -> 32
    min_rows = 8 * max(1, 4 // max(1, itemsize))
    rows = _cdiv(n, _LANES)

    if n % _LANES == 0:
        # Common case: zero-copy reshape to a lane-dense slab (no HBM pad pass).
        cur2d = current.reshape(rows, _LANES)
        last2d = last.reshape(rows, _LANES)
    else:
        # Ragged tail: pad by < 128 zero elements (|0-0| contributes 0).
        padded_n = rows * _LANES
        cur2d = jnp.pad(current.reshape(-1), (0, padded_n - n)).reshape(rows, _LANES)
        last2d = jnp.pad(last.reshape(-1), (0, padded_n - n)).reshape(rows, _LANES)

    # Block sizing: ~4 MiB per input block (scaled by dtype width), i.e. the
    # per-step overhead (~0.35 us) stays small versus the HBM transfer time.
    target_rows = _round_up(
        max(_TARGET_BLOCK_BYTES // (_LANES * itemsize), min_rows), min_rows)
    if rows <= target_rows:
        block_rows = rows          # single exact-fit block, no overrun, no mask
        num_blocks = 1
    else:
        block_rows = target_rows   # multiple of min_rows; last block masked
        num_blocks = _cdiv(rows, block_rows)

    total = _abs_diff_sum(cur2d, last2d, block_rows, num_blocks, rows)
    # Divide by the TRUE element count in the wrapper (free scalar XLA op).
    return (total / jnp.float32(n)).astype(jnp.float32)


@jax.custom_vjp
def pairwise_variation_l1(current, last):
    """mean(|current - last|) computed by a Pallas TPU kernel. Returns f32 scalar."""
    return _pairwise_l1_forward(current, last)


def _pairwise_l1_fwd(current, last):
    return _pairwise_l1_forward(current, last), (current, last)


def _pairwise_l1_bwd(res, g):
    current, last = res
    s = jnp.sign(current.astype(jnp.float32) - last.astype(jnp.float32))
    g_cur = (g * s) / jnp.float32(current.size)
    return g_cur.astype(current.dtype), (-g_cur).astype(last.dtype)


pairwise_variation_l1.defvjp(_pairwise_l1_fwd, _pairwise_l1_bwd)


class PairwiseVariationLossL1:
    """JAX/Pallas port of the stateful PyTorch loss.

    Note: `last_prediction` is host-side Python state (like the PyTorch
    module); the first-call branch and state update happen outside jit.
    """

    def __init__(self):
        self.last_prediction = None

    def reset_state(self):
        self.last_prediction = None

    def __call__(self, current_prediction):
        if self.last_prediction is None:
            self.last_prediction = jax.lax.stop_gradient(current_prediction)
            return jnp.zeros((), jnp.float32)
        last = self.last_prediction
        if last.shape[0] != current_prediction.shape[0]:
            last = last[: current_prediction.shape[0]]
        if last.shape != current_prediction.shape:
            raise ValueError(
                "PairwiseVariationLossL1: current prediction shape "
                f"{current_prediction.shape} is incompatible with stored "
                f"last prediction shape {self.last_prediction.shape}")
        variation = pairwise_variation_l1(current_prediction, last)
        self.last_prediction = jax.lax.stop_gradient(current_prediction)
        return variation


if __name__ == "__main__":
    key = jax.random.PRNGKey(0)
    k1, k2, k3, k4, k5, k6 = jax.random.split(key, 6)

    # Small NCHW predictions; size divisible by 128 -> zero-copy reshape path.
    x1 = jax.random.normal(k1, (2, 4, 16, 16), dtype=jnp.float32)
    x2 = jax.random.normal(k2, (2, 4, 16, 16), dtype=jnp.float32)

    loss = PairwiseVariationLossL1()
    out0 = loss(x1)  # first call -> 0 (state initialized)
    assert float(out0) == 0.0
    out1 = jax.block_until_ready(loss(x2))  # mean(|x2 - x1|) via Pallas kernel
    ref1 = jnp.mean(jnp.abs(x2 - x1))
    assert jnp.allclose(out1, ref1, rtol=1e-5, atol=1e-6), (out1, ref1)

    # Ragged size (not a multiple of 128) -> minimal zero-pad fallback path.
    y1 = jax.random.normal(k3, (2, 3, 33, 65), dtype=jnp.float32)
    y2 = jax.random.normal(k4, (2, 3, 33, 65), dtype=jnp.float32)
    out2 = jax.block_until_ready(pairwise_variation_l1(y2, y1))
    ref2 = jnp.mean(jnp.abs(y2 - y1))
    assert jnp.allclose(out2, ref2, rtol=1e-5, atol=1e-6), (out2, ref2)

    # Larger input -> multi-block grid + in-kernel tail-row masking.
    z1 = jax.random.normal(k5, (4, 4, 320, 256), dtype=jnp.float32)
    z2 = jax.random.normal(k6, (4, 4, 320, 256), dtype=jnp.float32)
    out3 = jax.block_until_ready(pairwise_variation_l1(z2, z1))
    ref3 = jnp.mean(jnp.abs(z2 - z1))
    assert jnp.allclose(out3, ref3, rtol=1e-4, atol=1e-5), (out3, ref3)

    print("KERNEL_OK")
</pallas_src>

<mosaic_0001>
module attributes {stable_mosaic.version = 11 : i64} {
  func.func @_block_l1_sum_kernel(%arg0: i32, %arg1: memref<16x128xf32, #tpu.memory_space<vmem>>, %arg2: memref<16x128xf32, #tpu.memory_space<vmem>>, %arg3: memref<1x1xf32, #tpu.memory_space<vmem>>) attributes {dimension_semantics = [#tpu.dimension_semantics<parallel>], iteration_bounds = array<i64: 1>, scalar_prefetch = 0 : i64, scratch_operands = 0 : i64, tpu.core_type = #tpu.core_type<tc>, window_params = [{transform_indices = @transform_0, window_bounds = array<i64: 16, 128>}, {transform_indices = @transform_1, window_bounds = array<i64: 16, 128>}, {transform_indices = @transform_2, window_bounds = array<i64: 1, 1>}]} {
    %c0 = arith.constant 0 : index
    %c0_0 = arith.constant 0 : index
    %0 = vector.load %arg1[%c0, %c0_0] : memref<16x128xf32, #tpu.memory_space<vmem>>, vector<16x128xf32>
    %c0_1 = arith.constant 0 : index
    %c0_2 = arith.constant 0 : index
    %1 = vector.load %arg2[%c0_1, %c0_2] : memref<16x128xf32, #tpu.memory_space<vmem>>, vector<16x128xf32>
    %2 = arith.subf %0, %1 : vector<16x128xf32>
    %3 = math.absf %2 : vector<16x128xf32>
    %4 = vector.shape_cast %3 : vector<16x128xf32> to vector<1x16x128xf32>
    %cst = arith.constant dense<0.000000e+00> : vector<1xf32>
    %5 = vector.multi_reduction <add>, %4, %cst [1, 2] : vector<1x16x128xf32> to vector<1xf32>
    %6 = vector.shape_cast %5 : vector<1xf32> to vector<1x1x1xf32>
    %7 = vector.extract %6[0, 0, 0] : f32 from vector<1x1x1xf32>
    %8 = vector.broadcast %7 : f32 to vector<1x1xf32>
    %c0_3 = arith.constant 0 : index
    %c0_4 = arith.constant 0 : index
    %9 = vector.load %arg3[%c0_3, %c0_4] : memref<1x1xf32, #tpu.memory_space<vmem>>, vector<1x1xf32>
    tpu.vector_store %arg3[%c0_3, %c0_4], %8 {strides = array<i32>} : memref<1x1xf32, #tpu.memory_space<vmem>>, vector<1x1xf32>,
    return
  }
  func.func @transform_0(%arg0: i32) -> (i32, i32) {
    %c0_i32 = arith.constant 0 : i32
    %c0_i32_0 = arith.constant 0 : i32
    return %arg0, %c0_i32 : i32, i32
  }
  func.func @transform_1(%arg0: i32) -> (i32, i32) {
    %c0_i32 = arith.constant 0 : i32
    %c0_i32_0 = arith.constant 0 : i32
    return %arg0, %c0_i32 : i32, i32
  }
  func.func @transform_2(%arg0: i32) -> (i32, i32) {
    %c0_i32 = arith.constant 0 : i32
    %c0_i32_0 = arith.constant 0 : i32
    return %arg0, %c0_i32 : i32, i32
  }
}

</mosaic_0001>

<llo_original>
// kernel: tpu_custom_call.1
$region0: #{tpu_custom_call.1}
  #allocation0 [shape = 'u32[]', space=smem, size = 0x4, offset = 0x4, fixed_abs, tag = 'smem constant byte address 0x4 - core index']
  #allocation1 [shape = 'u32[72,128]{1,0:T(1,128)}', space=vmem, size = 0x9000, scoped, tag = 'internal scratch']
  %s0 = inlined_call_operand.hbm [shape: f32[16,128], index: 0, kind: input, shape index: {}]
  %s1 = inlined_call_operand.hbm [shape: f32[16,128], index: 1, kind: input, shape index: {}]
  %s2 = inlined_call_operand.hbm [shape: f32[1,1], index: 2, kind: output, shape index: {}]
  %s3 = sld [smem:[#allocation0]]
  $region26: #{tpu_custom_call.1} parent=0
    _
  %s5 = ssub.s32 1, %s3
  %s6 = scalar_select 0, %s5, %s3
  $region1: #{tpu_custom_call.1} parent=0
    #allocation2 [shape = 'u8[8192]{0}', space=vmem, size = 0x2000, scoped, tag = 'input window, operand 0, single buffered']
    #allocation3 [shape = 's32[1]{0}', space=sflag, size = 0x4, scoped, tag = 'scoped memory for tpu_custom_call.1']
    #allocation4 [shape = 's32[1]{0}', space=sflag, size = 0x4, scoped, tag = 'scoped memory for tpu_custom_call.1']
    #allocation5 [shape = 'u8[8192]{0}', space=vmem, size = 0x2000, scoped, tag = 'input window, operand 1, single buffered']
    #allocation6 [shape = 's32[1]{0}', space=sflag, size = 0x4, scoped, tag = 'scoped memory for tpu_custom_call.1']
    #allocation7 [shape = 'u8[512]{0}', space=vmem, size = 0x400, scoped, tag = 'output window, operand 0, single buffered']
    %7 = vsyncpa [#allocation3], 0
    %8 = vsyncpa [#allocation6], 0
    %9 = vsyncpa [#allocation4], 0
    // Predicated region
    $region2: #{tpu_custom_call.1} parent=1 // pred_check
      _
    $region3: #{tpu_custom_call.1} parent=1 // pred_check_branch
      %11 = sbr.rel (0) target = $region5
    $region4: #{tpu_custom_call.1} parent=1 // pred_region
      %13 = vsyncadd [#allocation3], 0
      %s14 = sshll.u32 %s0, 4
      %s15 = int_to_ptr.hbm [resolvable:$true] %s14
      %s16 = sshll.u32 [#allocation2], 4
      %s17 = int_to_ptr.vmem [resolvable:$true] %s16
      %22 = dma.hbm_to_vmem [thread:$0]  %s15, 256, %s17, [#allocation3], 128, 128, 8
    $region5: #{tpu_custom_call.1} parent=1 // pred_fallthru
      _
    // Predicated region
    $region6: #{tpu_custom_call.1} parent=1 // pred_check
      _
    $region7: #{tpu_custom_call.1} parent=1 // pred_check_branch
      %24 = sbr.rel (0) target = $region9
    $region8: #{tpu_custom_call.1} parent=1 // pred_region
      %26 = vsyncadd [#allocation6], 0
      %s27 = sshll.u32 %s1, 4
      %s28 = int_to_ptr.hbm [resolvable:$true] %s27
      %s29 = sshll.u32 [#allocation5], 4
      %s30 = int_to_ptr.vmem [resolvable:$true] %s29
      %35 = dma.hbm_to_vmem [thread:$0]  %s28, 256, %s30, [#allocation6], 128, 128, 8
    $region9: #{tpu_custom_call.1} parent=1 // pred_fallthru
      _
    // Predicated region
    $region10: #{tpu_custom_call.1} parent=1 // pred_check
      _
    $region11: #{tpu_custom_call.1} parent=1 // pred_check_branch
      %37 = sbr.rel (0) target = $region13
    $region12: #{tpu_custom_call.1} parent=1 // pred_region
      %39 = dma.done [#allocation3], 256
    $region13: #{tpu_custom_call.1} parent=1 // pred_fallthru
      _
    // Predicated region
    $region14: #{tpu_custom_call.1} parent=1 // pred_check
      _
    $region15: #{tpu_custom_call.1} parent=1 // pred_check_branch
      %41 = sbr.rel (0) target = $region17
    $region16: #{tpu_custom_call.1} parent=1 // pred_region
      %43 = dma.done [#allocation6], 256
    $region17: #{tpu_custom_call.1} parent=1 // pred_fallthru
      _
    %v44 = vld [vmem:[#allocation2] sm:$0xff]
    %v45 = vld [vmem:[#allocation2 + $0x8] sm:$0xff]
    %v46 = vld [vmem:[#allocation5] sm:$0xff]
    %v47 = vld [vmem:[#allocation5 + $0x8] sm:$0xff]
    %v48 = vsub.f32 %v44, %v46
    %v49 = vsub.f32 %v45, %v47
    %v50 = vand.u32 2147483647, %v48
    %v51 = vand.u32 2147483647, %v49
    %v52 = vadd.f32 %v50, %v51
    %53 = vadd.xlane.f32.xlu0 %v52
    %v54 = vpop.xlane.xlu0 %53
    %v55 = vrot.slane %v54, 4
    %v56 = vadd.f32 %v54, %v55
    %v57 = vrot.slane %v56, 2
    %v58 = vadd.f32 %v56, %v57
    %v59 = vrot.slane %v58, 1
    %v60 = vadd.f32 %v58, %v59
    %s61 = vtos %v60
    %v62 = vstv %s61
    %vm63 = vcmask 0
    %64 = vst.msk [vmem:[#allocation7] sm:$0x1] %vm63, %v62
    // Predicated region
    $region18: #{tpu_custom_call.1} parent=1 // pred_check
      _
    $region19: #{tpu_custom_call.1} parent=1 // pred_check_branch
      %66 = sbr.rel (0) target = $region21
    $region20: #{tpu_custom_call.1} parent=1 // pred_region
      %68 = vsyncadd [#allocation4], 0
      %s70 = sshll.u32 [#allocation7], 4
      %s71 = int_to_ptr.vmem [resolvable:$true] %s70
      %s72 = sshll.u32 %s2, 4
      %s73 = int_to_ptr.hbm [resolvable:$true] %s72
      %75 = dma.vmem_to_hbm [thread:$0]  %s71, 16, %s73, [#allocation4]
    $region21: #{tpu_custom_call.1} parent=1 // pred_fallthru
      _
    // Predicated region
    $region22: #{tpu_custom_call.1} parent=1 // pred_check
      _
    $region23: #{tpu_custom_call.1} parent=1 // pred_check_branch
      %77 = sbr.rel (0) target = $region25
    $region24: #{tpu_custom_call.1} parent=1 // pred_region
      %79 = dma.done [#allocation4], 16
    $region25: #{tpu_custom_call.1} parent=1 // pred_fallthru
      _
    %80 = vsyncpa [#allocation3], 1
    %81 = vsyncpa [#allocation6], 1
    %82 = vsyncpa [#allocation4], 1

</llo_original>
